<compile_context>
chip_gen: v6e
topology: v6e:2x2x1
jax: 0.10.0
libtpu: 0.0.40
codegen_flags: <defaults>
</compile_context>

<pallas_src>
import jax
import jax.numpy as jnp
from jax.experimental import pallas as pl
from jax.experimental.pallas import tpu as pltpu


_LANE = 128
_SUBLANE = 8
_VMEM_BUDGET = 24 * 1024 * 1024        # per-step footprint target (fits all chips)
_VMEM_LIMIT = 32 * 1024 * 1024         # scoped VMEM limit requested from Mosaic
_WEIGHT_TILE_BUDGET = 8 * 1024 * 1024  # resident (double-buffered) weight tile cap


def _round_up(x, m):
    return ((x + m - 1) // m) * m


def linear_conv_kernel(x_ref, w_ref, b_ref, o_ref):
    # x_ref: (tm, in_c), w_ref: (in_c, tn) -> canonical (M,K)x(K,N) MXU matmul
    # with f32 accumulation; f32 bias row (1, tn) broadcasts over rows on the VPU.
    acc = jnp.dot(x_ref[...], w_ref[...], preferred_element_type=jnp.float32)
    o_ref[...] = (acc + b_ref[...]).astype(o_ref.dtype)


def prepare_linear_params(weight, bias=None, compute_dtype=None):
    """One-time parameter prep (do at init time, not per forward call).

    weight: [out_c, in_c]   (PyTorch nn.Linear layout)
    bias:   [out_c] or None
    Returns (w_t, b2d, out_c): transposed + lane-padded weight [in_c, out_c_pad],
    f32 bias row [1, out_c_pad], and the true out_c for output slicing.
    """
    out_c, in_c = weight.shape
    out_c_pad = _round_up(out_c, _LANE)
    w_t = weight.T  # [in_c, out_c] — transposed once, amortized over all calls
    if bias is None:
        bias = jnp.zeros((out_c,), jnp.float32)
    if out_c_pad != out_c:
        w_t = jnp.pad(w_t, ((0, 0), (0, out_c_pad - out_c)))
        bias = jnp.pad(bias, (0, out_c_pad - out_c))
    if compute_dtype is not None:
        w_t = w_t.astype(compute_dtype)
    b2d = bias.reshape(1, out_c_pad).astype(jnp.float32)
    return w_t, b2d, out_c


def linear_conv(x, w_t, b2d, out_c, *, row_tile=1024, compute_dtype=None):
    """y = x @ W^T + b, with W already in prepared (transposed, padded) form."""
    out_dtype = x.dtype
    if compute_dtype is not None:
        x = x.astype(compute_dtype)   # e.g. jnp.bfloat16: halves HBM/VMEM bytes

    n, in_c = x.shape
    in_c_w, out_c_pad = w_t.shape
    assert in_c == in_c_w, (in_c, in_c_w)

    x_bytes = x.dtype.itemsize
    w_bytes = w_t.dtype.itemsize
    o_bytes = jnp.dtype(out_dtype).itemsize

    # Out-channel tile: bound the VMEM-resident (double-buffered) weight tile.
    tn = out_c_pad
    if 2 * in_c * tn * w_bytes > _WEIGHT_TILE_BUDGET:
        for cand in (2048, 1024, 512, 256, 128):
            if out_c_pad % cand == 0:
                tn = cand
                if 2 * in_c * tn * w_bytes <= _WEIGHT_TILE_BUDGET:
                    break

    # Row tile: multiple of 8; aim for >=2 row steps when n is large enough
    # (v7x megacore sharding), never larger than the sublane-rounded row count.
    tm = min(row_tile, max(256, _round_up(pl.cdiv(n, 2), _SUBLANE)))
    tm = max(_SUBLANE, min(tm, _round_up(n, _SUBLANE)))

    # Explicit per-step VMEM footprint check (x/out double-buffered by pipeliner).
    def footprint(tm_):
        return (2 * tm_ * in_c * x_bytes + 2 * tm_ * tn * o_bytes
                + 2 * in_c * tn * w_bytes + 2 * tn * 4)

    while footprint(tm) > _VMEM_BUDGET and tm > _SUBLANE:
        tm = max(_SUBLANE, _round_up(tm // 2, _SUBLANE))

    grid = (pl.cdiv(n, tm), out_c_pad // tn)

    cost = pl.CostEstimate(
        flops=2 * n * in_c * out_c_pad,
        transcendentals=0,
        bytes_accessed=(n * in_c * x_bytes + in_c * out_c_pad * w_bytes
                        + out_c_pad * 4 + n * out_c_pad * o_bytes),
    )

    y_pad = pl.pallas_call(
        linear_conv_kernel,
        out_shape=jax.ShapeDtypeStruct((n, out_c_pad), out_dtype),
        grid_spec=pl.GridSpec(
            grid=grid,
            in_specs=[
                # x: one (tm, in_c) row tile per row step; block index is
                # constant across the out-channel axis so it isn't re-fetched.
                pl.BlockSpec((tm, in_c), lambda i, j: (i, 0)),
                # weight (pre-transposed): (in_c, tn) column tile, VMEM-resident
                # across all row steps.
                pl.BlockSpec((in_c, tn), lambda i, j: (0, j)),
                # f32 bias row.
                pl.BlockSpec((1, tn), lambda i, j: (0, j)),
            ],
            out_specs=pl.BlockSpec((tm, tn), lambda i, j: (i, j)),
        ),
        compiler_params=pltpu.CompilerParams(
            dimension_semantics=("parallel", "parallel"),
            vmem_limit_bytes=_VMEM_LIMIT,
        ),
        cost_estimate=cost,
    )(x, w_t, b2d)

    # Padded out-channel columns (zeros of W / b) are sliced off here.
    return y_pad[:, :out_c]


if __name__ == "__main__":
    key = jax.random.PRNGKey(0)
    k_x, k_w, k_b, k_ei = jax.random.split(key, 4)

    num_nodes = 8
    in_channels = 32
    out_channels = 16

    x = jax.random.normal(k_x, (num_nodes, in_channels), dtype=jnp.float32)
    # Synthetic parameters in torch.nn.Linear(in_channels, out_channels) layout.
    weight = jax.random.normal(
        k_w, (out_channels, in_channels), dtype=jnp.float32) * 0.1
    bias = jax.random.normal(k_b, (out_channels,), dtype=jnp.float32) * 0.1

    # edge_index / edge_weight are unused by LinearConv.forward (API fidelity only).
    edge_index = jax.random.randint(k_ei, (2, 16), 0, num_nodes)

    # One-time parameter prep (transpose + lane padding), then the kernel call.
    w_t, b2d, out_c = prepare_linear_params(weight, bias)
    y = linear_conv(x, w_t, b2d, out_c)
    jax.block_until_ready(y)

    # Correctness check against plain-JAX reference of the Linear op.
    y_ref = x @ weight.T + bias
    assert y.shape == (num_nodes, out_channels)
    assert jnp.allclose(y, y_ref, atol=1e-5, rtol=1e-5)

    print("KERNEL_OK")
</pallas_src>

<mosaic_0001>
module attributes {stable_mosaic.version = 11 : i64} {
  func.func @linear_conv_kernel(%arg0: i32, %arg1: i32, %arg2: memref<8x32xf32, #tpu.memory_space<vmem>>, %arg3: memref<32x128xf32, #tpu.memory_space<vmem>>, %arg4: memref<1x128xf32, #tpu.memory_space<vmem>>, %arg5: memref<8x128xf32, #tpu.memory_space<vmem>>) attributes {dimension_semantics = [#tpu.dimension_semantics<parallel>, #tpu.dimension_semantics<parallel>], iteration_bounds = array<i64: 1, 1>, scalar_prefetch = 0 : i64, scratch_operands = 0 : i64, tpu.core_type = #tpu.core_type<tc>, window_params = [{transform_indices = @transform_0, window_bounds = array<i64: 8, 32>}, {transform_indices = @transform_1, window_bounds = array<i64: 32, 128>}, {transform_indices = @transform_2, window_bounds = array<i64: 1, 128>}, {transform_indices = @transform_3, window_bounds = array<i64: 8, 128>}]} {
    %c0 = arith.constant 0 : index
    %c0_0 = arith.constant 0 : index
    %0 = vector.load %arg2[%c0, %c0_0] : memref<8x32xf32, #tpu.memory_space<vmem>>, vector<8x32xf32>
    %c0_1 = arith.constant 0 : index
    %c0_2 = arith.constant 0 : index
    %1 = vector.load %arg3[%c0_1, %c0_2] : memref<32x128xf32, #tpu.memory_space<vmem>>, vector<32x128xf32>
    %cst = arith.constant dense<0.000000e+00> : vector<8x128xf32>
    %2 = tpu.matmul %0, %1, %cst {dimension_numbers = #tpu.dot_dimension_numbers<[1], [0], [0], [1], [0, 0, 1, 1], [], []>} : vector<8x32xf32>, vector<32x128xf32>, vector<8x128xf32> -> vector<8x128xf32>
    %c0_3 = arith.constant 0 : index
    %c0_4 = arith.constant 0 : index
    %3 = vector.load %arg4[%c0_3, %c0_4] : memref<1x128xf32, #tpu.memory_space<vmem>>, vector<1x128xf32>
    %4 = vector.broadcast %3 : vector<1x128xf32> to vector<8x128xf32>
    %5 = arith.addf %2, %4 : vector<8x128xf32>
    %c0_5 = arith.constant 0 : index
    %c0_6 = arith.constant 0 : index
    %6 = vector.load %arg5[%c0_5, %c0_6] : memref<8x128xf32, #tpu.memory_space<vmem>>, vector<8x128xf32>
    tpu.vector_store %arg5[%c0_5, %c0_6], %5 {strides = array<i32>} : memref<8x128xf32, #tpu.memory_space<vmem>>, vector<8x128xf32>,
    return
  }
  func.func @transform_0(%arg0: i32, %arg1: i32) -> (i32, i32) {
    %c0_i32 = arith.constant 0 : i32
    %c0_i32_0 = arith.constant 0 : i32
    return %arg0, %c0_i32 : i32, i32
  }
  func.func @transform_1(%arg0: i32, %arg1: i32) -> (i32, i32) {
    %c0_i32 = arith.constant 0 : i32
    %c0_i32_0 = arith.constant 0 : i32
    return %c0_i32, %arg1 : i32, i32
  }
  func.func @transform_2(%arg0: i32, %arg1: i32) -> (i32, i32) {
    %c0_i32 = arith.constant 0 : i32
    %c0_i32_0 = arith.constant 0 : i32
    return %c0_i32, %arg1 : i32, i32
  }
  func.func @transform_3(%arg0: i32, %arg1: i32) -> (i32, i32) {
    %c0_i32 = arith.constant 0 : i32
    return %arg0, %arg1 : i32, i32
  }
}

</mosaic_0001>

<llo_original>
// kernel: tpu_custom_call.1
$region0: #{tpu_custom_call.1}
  #allocation0 [shape = 'u32[]', space=smem, size = 0x4, offset = 0x4, fixed_abs, tag = 'smem constant byte address 0x4 - core index']
  #allocation1 [shape = 'u32[144,128]{1,0:T(1,128)}', space=vmem, size = 0x12000, scoped, tag = 'internal scratch']
  %s0 = inlined_call_operand.hbm [shape: f32[8,32], index: 0, kind: input, shape index: {}]
  %s1 = inlined_call_operand.hbm [shape: f32[32,128], index: 1, kind: input, shape index: {}]
  %s2 = inlined_call_operand.vmem [shape: f32[1,128], index: 2, kind: input, shape index: {}]
  %s3 = inlined_call_operand.hbm [shape: f32[8,128], index: 3, kind: output, shape index: {}]
  %s4 = sld [smem:[#allocation0]]
  $region30: #{tpu_custom_call.1} parent=0
    _
  %s6 = ssub.s32 1, %s4
  %s7 = scalar_select 0, %s6, %s4
  $region1: #{tpu_custom_call.1} parent=0
    #allocation2 [shape = 'u8[4096]{0}', space=vmem, size = 0x1000, scoped, tag = 'input window, operand 0, single buffered']
    #allocation3 [shape = 's32[1]{0}', space=sflag, size = 0x4, scoped, tag = 'scoped memory for tpu_custom_call.1']
    #allocation4 [shape = 's32[1]{0}', space=sflag, size = 0x4, scoped, tag = 'scoped memory for tpu_custom_call.1']
    #allocation5 [shape = 'u8[16384]{0}', space=vmem, size = 0x4000, scoped, tag = 'input window, operand 1, single buffered']
    #allocation6 [shape = 's32[1]{0}', space=sflag, size = 0x4, scoped, tag = 'scoped memory for tpu_custom_call.1']
    #allocation7 [shape = 'u8[4096]{0}', space=vmem, size = 0x1000, scoped, tag = 'output window, operand 0, single buffered']
    %8 = vsyncpa [#allocation3], 0
    %9 = vsyncpa [#allocation6], 0
    %10 = vsyncpa [#allocation4], 0
    // Predicated region
    $region2: #{tpu_custom_call.1} parent=1 // pred_check
      _
    $region3: #{tpu_custom_call.1} parent=1 // pred_check_branch
      %12 = sbr.rel (0) target = $region5
    $region4: #{tpu_custom_call.1} parent=1 // pred_region
      %s14 = ssub.s32 128, 128
      %15 = vsyncadd [#allocation3], %s14
      %s17 = sshll.u32 [#allocation2], 4
      %s18 = int_to_ptr.vmem [resolvable:$true] %s17
      %20 = dma.hbm_to_vmem [thread:$0]  %s0, 128, %s18, [#allocation3]
    $region5: #{tpu_custom_call.1} parent=1 // pred_fallthru
      _
    // Predicated region
    $region6: #{tpu_custom_call.1} parent=1 // pred_check
      _
    $region7: #{tpu_custom_call.1} parent=1 // pred_check_branch
      %22 = sbr.rel (0) target = $region9
    $region8: #{tpu_custom_call.1} parent=1 // pred_region
      %s24 = ssub.s32 512, 512
      %25 = vsyncadd [#allocation6], %s24
      %s26 = sshll.u32 [#allocation5], 4
      %s27 = int_to_ptr.vmem [resolvable:$true] %s26
      %32 = dma.hbm_to_vmem [thread:$0]  %s1, 512, %s27, [#allocation6], 128, 128, 8
    $region9: #{tpu_custom_call.1} parent=1 // pred_fallthru
      _
    // Predicated region
    $region10: #{tpu_custom_call.1} parent=1 // pred_check
      _
    $region11: #{tpu_custom_call.1} parent=1 // pred_check_branch
      %34 = sbr.rel (0) target = $region13
    $region12: #{tpu_custom_call.1} parent=1 // pred_region
      _
    $region13: #{tpu_custom_call.1} parent=1 // pred_fallthru
      _
    // Predicated region
    $region14: #{tpu_custom_call.1} parent=1 // pred_check
      _
    $region15: #{tpu_custom_call.1} parent=1 // pred_check_branch
      %36 = sbr.rel (0) target = $region17
    $region16: #{tpu_custom_call.1} parent=1 // pred_region
      %37 = dma.done [#allocation3], 128
    $region17: #{tpu_custom_call.1} parent=1 // pred_fallthru
      _
    // Predicated region
    $region18: #{tpu_custom_call.1} parent=1 // pred_check
      _
    $region19: #{tpu_custom_call.1} parent=1 // pred_check_branch
      %39 = sbr.rel (0) target = $region21
    $region20: #{tpu_custom_call.1} parent=1 // pred_region
      %40 = dma.done [#allocation6], 512
    $region21: #{tpu_custom_call.1} parent=1 // pred_fallthru
      _
    %v41 = vld [vmem:[#allocation2] sm:$0xff]
    %v42 = vld [vmem:[#allocation5] sm:$0xff]
    %v43 = vld [vmem:[#allocation5 + $0x8] sm:$0xff]
    %v44 = vld [vmem:[#allocation5 + $0x10] sm:$0xff]
    %v45 = vld [vmem:[#allocation5 + $0x18] sm:$0xff]
    %v46 = vld [vmem:[%s2] sm:$0x1]
    %v48 = vlaneseq
    %v49 = vshrl.u32 %v48, 7
    %v50 = vsub.s32 0, %v49
    %v51 = vrot.slane %v46, %v50
    %vm53 = vcmask 261120
    %v55 = vsel %vm53, %v41, 0
    %57 = vmatprep.subr.mxu0 0.0
    %58 = vmatpush1.msra.mxu0 0.0
    %59 = vmatprep.subr.mxu0 0.0
    %60 = vmatpush1.msra.mxu0 0.0
    %61 = vmatprep.subr.mxu0 0.0
    %62 = vmatpush1.msra.mxu0 0.0
    %63 = vmatprep.subr.mxu0 0.0
    %64 = vmatpush1.msra.mxu0 0.0
    %65 = vmatprep.subr.mxu0 0.0
    %66 = vmatpush1.msra.mxu0 0.0
    %67 = vmatprep.subr.mxu0 0.0
    %68 = vmatpush1.msra.mxu0 0.0
    %69 = vmatprep.subr.mxu0 0.0
    %70 = vmatpush1.msra.mxu0 0.0
    %71 = vmatprep.subr.mxu0 0.0
    %72 = vmatpush1.msra.mxu0 0.0
    %73 = vmatprep.subr.mxu0 0.0
    %74 = vmatpush1.msra.mxu0 0.0
    %75 = vmatprep.subr.mxu0 0.0
    %76 = vmatpush1.msra.mxu0 0.0
    %77 = vmatprep.subr.mxu0 0.0
    %78 = vmatpush1.msra.mxu0 0.0
    %79 = vmatprep.subr.mxu0 0.0
    %80 = vmatpush1.msra.mxu0 0.0
    %81 = vmatprep.subr.mxu0 0.0
    %82 = vmatpush1.msra.mxu0 %v45
    %83 = vmatprep.subr.mxu0 0.0
    %84 = vmatpush1.msra.mxu0 %v44
    %85 = vmatprep.subr.mxu0 0.0
    %86 = vmatpush1.msra.mxu0 %v43
    %87 = vmatprep.subr.mxu0 0.0
    %88 = vmatpush1.msra.mxu0 %v42
    %89 = vmatprep.subr.mxu0 0.0
    %90 = vmatpush2.msra.mxu0 0.0
    %91 = vmatprep.subr.mxu0 0.0
    %92 = vmatpush2.msra.mxu0 0.0
    %93 = vmatprep.subr.mxu0 0.0
    %94 = vmatpush2.msra.mxu0 0.0
    %95 = vmatprep.subr.mxu0 0.0
    %96 = vmatpush2.msra.mxu0 0.0
    %97 = vmatprep.subr.mxu0 0.0
    %98 = vmatpush2.msra.mxu0 0.0
    %99 = vmatprep.subr.mxu0 0.0
    %100 = vmatpush2.msra.mxu0 0.0
    %101 = vmatprep.subr.mxu0 0.0
    %102 = vmatpush2.msra.mxu0 0.0
    %103 = vmatprep.subr.mxu0 0.0
    %104 = vmatpush2.msra.mxu0 0.0
    %105 = vmatprep.subr.mxu0 0.0
    %106 = vmatpush2.msra.mxu0 0.0
    %107 = vmatprep.subr.mxu0 0.0
    %108 = vmatpush2.msra.mxu0 0.0
    %109 = vmatprep.subr.mxu0 0.0
    %110 = vmatpush2.msra.mxu0 0.0
    %111 = vmatprep.subr.mxu0 0.0
    %112 = vmatpush2.msra.mxu0 0.0
    %113 = vmatprep.subr.mxu0 0.0
    %114 = vmatpush2.msra.mxu0 0.0
    %115 = vmatprep.subr.mxu0 0.0
    %116 = vmatpush2.msra.mxu0 0.0
    %117 = vmatprep.subr.mxu0 0.0
    %118 = vmatpush2.msra.mxu0 0.0
    %119 = vmatprep.subr.mxu0 0.0
    %120 = vmatpush2.msra.mxu0 0.0
    %121 = vmatprep.mubr.f32.mxu0 0.0
    %122 = vmatmul.mubr.f32.gmra.mxu0 %v55
    %v123 = vpop.f32.mrf.mxu0
    %v124 = vadd.f32 %v51, %v123
    %v125 = vpop.f32.mrf.mxu0
    %126 = vdwg.mxu0
    %127 = vst [vmem:[#allocation7] sm:$0xff] %v124
    // Predicated region
    $region22: #{tpu_custom_call.1} parent=1 // pred_check
      _
    $region23: #{tpu_custom_call.1} parent=1 // pred_check_branch
      %129 = sbr.rel (0) target = $region25
    $region24: #{tpu_custom_call.1} parent=1 // pred_region
      %s131 = ssub.s32 128, 128
      %132 = vsyncadd [#allocation4], %s131
      %s134 = sshll.u32 [#allocation7], 4
      %s135 = int_to_ptr.vmem [resolvable:$true] %s134
      %137 = dma.vmem_to_hbm [thread:$0]  %s135, 128, %s3, [#allocation4]
    $region25: #{tpu_custom_call.1} parent=1 // pred_fallthru
      _
    // Predicated region
    $region26: #{tpu_custom_call.1} parent=1 // pred_check
      _
    $region27: #{tpu_custom_call.1} parent=1 // pred_check_branch
      %139 = sbr.rel (0) target = $region29
    $region28: #{tpu_custom_call.1} parent=1 // pred_region
      %140 = dma.done [#allocation4], 128
    $region29: #{tpu_custom_call.1} parent=1 // pred_fallthru
      _
    %141 = vsyncpa [#allocation3], 1
    %142 = vsyncpa [#allocation6], 1
    %143 = vsyncpa [#allocation4], 1

</llo_original>
